<compile_context>
chip_gen: v5e
topology: v5e:2x2
jax: 0.10.0
libtpu: 0.0.40
codegen_flags: <defaults>
</compile_context>

<pallas_src>
import jax
import jax.numpy as jnp
from jax import lax
from jax.experimental import pallas as pl
from jax.experimental.pallas import tpu as pltpu

NORM_EPS = 1e-12  # torch F.normalize default eps


# ----------------------------------------------------------------------------
# Fused kernel: one batch tile per grid step.
#   x_ref : (TB, n, c)  batch tile of per-class features
#   sc_ref: (n, c)      class anchors (VMEM-resident across grid steps)
#   o_ref : (TB, n)     cosine similarity of each class row
# ----------------------------------------------------------------------------
def _au_detect2_kernel(x_ref, sc_ref, o_ref):
    x = x_ref[...]                                            # (TB, n, c) f32
    sc = jnp.maximum(sc_ref[...], 0.0)                        # ReLU(sc), (n, c)

    # F.normalize semantics: v / max(||v||_2, eps) == v * rsqrt(max(||v||^2, eps^2))
    eps2 = NORM_EPS * NORM_EPS
    sc_inv = lax.rsqrt(jnp.maximum(
        jnp.sum(sc * sc, axis=-1, keepdims=True), eps2))      # (n, 1)
    x_inv = lax.rsqrt(jnp.maximum(
        jnp.sum(x * x, axis=-1, keepdims=True), eps2))        # (TB, n, 1)

    scn = sc * sc_inv                                         # (n, c)
    # per-class cosine similarity, lane-dense (TB, n) store (no keepdims)
    o_ref[...] = jnp.sum((x * x_inv) * scn[None, :, :], axis=-1)


def _choose_tb(B, cap=512):
    """Batch-tile size: multiple of 8, <= cap, and >=2 grid steps when possible."""
    if B <= 8:
        return B                              # single tiny step (test-case path)
    tb = max(8, min(cap, (B // 8) * 8))
    if pl.cdiv(B, tb) < 2:                    # keep both v7x TensorCores busy
        tb = max(8, ((pl.cdiv(B, 2) + 7) // 8) * 8)
    return tb


def au_detect2_forward(x, sc, *, tb_cap=512):
    """x: (B, n, c) float32, sc: (n, c) float32  ->  (B, n) float32."""
    B, n, c = x.shape
    assert sc.shape == (n, c)
    x = x.astype(jnp.float32)
    sc = sc.astype(jnp.float32)

    tb = _choose_tb(B, tb_cap)
    grid = (pl.cdiv(B, tb),)

    return pl.pallas_call(
        _au_detect2_kernel,
        grid=grid,
        in_specs=[
            # batch tile of x
            pl.BlockSpec((tb, n, c), lambda b: (b, 0, 0)),
            # sc: constant index_map -> stays VMEM-resident (single DMA)
            pl.BlockSpec((n, c), lambda b: (0, 0)),
        ],
        out_specs=pl.BlockSpec((tb, n), lambda b: (b, 0)),
        out_shape=jax.ShapeDtypeStruct((B, n), jnp.float32),
        compiler_params=pltpu.CompilerParams(
            dimension_semantics=("parallel",),   # megacore sharding on v7x
            vmem_limit_bytes=48 << 20),          # headroom for TB=512 double-buffer
    )(x, sc)


# Pure-JAX reference (mirrors the PyTorch forward) for in-script verification.
def _reference(x, sc):
    scr = jnp.maximum(sc, 0.0)
    scr = scr / jnp.maximum(
        jnp.sqrt(jnp.sum(scr * scr, axis=-1, keepdims=True)), NORM_EPS)
    xn = x / jnp.maximum(
        jnp.sqrt(jnp.sum(x * x, axis=-1, keepdims=True)), NORM_EPS)
    return jnp.sum(xn * scr[None, :, :], axis=-1)


if __name__ == "__main__":
    key = jax.random.PRNGKey(0)
    B = 2
    num_classes = 6      # hard-coded in AU_Detect2.__init__
    in_channels = 512    # hard-coded in AU_Detect2.__init__

    kx, ks = jax.random.split(key)
    x = jax.random.normal(kx, (B, num_classes, in_channels), jnp.float32)
    # sc parameter: xavier_uniform_ over (num_classes, in_channels)
    limit = (6.0 / (num_classes + in_channels)) ** 0.5
    sc = jax.random.uniform(ks, (num_classes, in_channels), jnp.float32,
                            minval=-limit, maxval=limit)

    cl = au_detect2_forward(x, sc)
    cl = jax.block_until_ready(cl)

    assert cl.shape == (B, num_classes), cl.shape
    assert bool(jnp.all(jnp.isfinite(cl)))
    ref = _reference(x, sc)
    assert bool(jnp.allclose(cl, ref, rtol=1e-5, atol=1e-5)), \
        float(jnp.max(jnp.abs(cl - ref)))
    print("KERNEL_OK")
</pallas_src>

<mosaic_0001>
module attributes {stable_mosaic.version = 11 : i64} {
  func.func @_au_detect2_kernel(%arg0: i32, %arg1: memref<2x6x512xf32, #tpu.memory_space<vmem>>, %arg2: memref<6x512xf32, #tpu.memory_space<vmem>>, %arg3: memref<2x6xf32, #tpu.memory_space<vmem>>) attributes {dimension_semantics = [#tpu.dimension_semantics<parallel>], iteration_bounds = array<i64: 1>, scalar_prefetch = 0 : i64, scratch_operands = 0 : i64, tpu.core_type = #tpu.core_type<tc>, window_params = [{transform_indices = @transform_0, window_bounds = array<i64: 2, 6, 512>}, {pipeline_mode = #tpu.pipeline_mode<synchronous>, transform_indices = @transform_1, window_bounds = array<i64: 6, 512>}, {transform_indices = @transform_2, window_bounds = array<i64: 2, 6>}]} {
    %c0 = arith.constant 0 : index
    %c0_0 = arith.constant 0 : index
    %c0_1 = arith.constant 0 : index
    %0 = vector.load %arg1[%c0, %c0_0, %c0_1] : memref<2x6x512xf32, #tpu.memory_space<vmem>>, vector<2x6x512xf32>
    %c0_2 = arith.constant 0 : index
    %c0_3 = arith.constant 0 : index
    %1 = vector.load %arg2[%c0_2, %c0_3] : memref<6x512xf32, #tpu.memory_space<vmem>>, vector<6x512xf32>
    %cst = arith.constant 0.000000e+00 : f32
    %2 = vector.broadcast %cst : f32 to vector<6x512xf32>
    %3 = arith.maximumf %1, %2 : vector<6x512xf32>
    %4 = arith.mulf %3, %3 : vector<6x512xf32>
    %cst_4 = arith.constant dense<0.000000e+00> : vector<6xf32>
    %5 = vector.multi_reduction <add>, %4, %cst_4 [1] : vector<6x512xf32> to vector<6xf32>
    %6 = vector.shape_cast %5 : vector<6xf32> to vector<6x1xf32>
    %cst_5 = arith.constant 1.000000e-24 : f32
    %7 = vector.broadcast %cst_5 : f32 to vector<6x1xf32>
    %8 = arith.maximumf %6, %7 : vector<6x1xf32>
    %9 = math.rsqrt %8 : vector<6x1xf32>
    %10 = arith.mulf %0, %0 : vector<2x6x512xf32>
    %cst_6 = arith.constant dense<0.000000e+00> : vector<2x6xf32>
    %11 = vector.multi_reduction <add>, %10, %cst_6 [2] : vector<2x6x512xf32> to vector<2x6xf32>
    %12 = vector.shape_cast %11 : vector<2x6xf32> to vector<2x6x1xf32>
    %cst_7 = arith.constant 1.000000e-24 : f32
    %13 = vector.broadcast %cst_7 : f32 to vector<2x6x1xf32>
    %14 = arith.maximumf %12, %13 : vector<2x6x1xf32>
    %15 = math.rsqrt %14 : vector<2x6x1xf32>
    %16 = vector.broadcast %9 : vector<6x1xf32> to vector<6x512xf32>
    %17 = arith.mulf %3, %16 : vector<6x512xf32>
    %18 = vector.broadcast %15 : vector<2x6x1xf32> to vector<2x6x512xf32>
    %19 = arith.mulf %0, %18 : vector<2x6x512xf32>
    %20 = vector.shape_cast %17 : vector<6x512xf32> to vector<1x6x512xf32>
    %21 = vector.broadcast %20 : vector<1x6x512xf32> to vector<2x6x512xf32>
    %22 = arith.mulf %19, %21 : vector<2x6x512xf32>
    %cst_8 = arith.constant dense<0.000000e+00> : vector<2x6xf32>
    %23 = vector.multi_reduction <add>, %22, %cst_8 [2] : vector<2x6x512xf32> to vector<2x6xf32>
    %c0_9 = arith.constant 0 : index
    %c0_10 = arith.constant 0 : index
    %24 = vector.load %arg3[%c0_9, %c0_10] : memref<2x6xf32, #tpu.memory_space<vmem>>, vector<2x6xf32>
    tpu.vector_store %arg3[%c0_9, %c0_10], %23 {strides = array<i32>} : memref<2x6xf32, #tpu.memory_space<vmem>>, vector<2x6xf32>,
    return
  }
  func.func @transform_0(%arg0: i32) -> (i32, i32, i32) {
    %c0_i32 = arith.constant 0 : i32
    %c0_i32_0 = arith.constant 0 : i32
    %c0_i32_1 = arith.constant 0 : i32
    return %arg0, %c0_i32, %c0_i32_0 : i32, i32, i32
  }
  func.func @transform_1(%arg0: i32) -> (i32, i32) {
    %c0_i32 = arith.constant 0 : i32
    %c0_i32_0 = arith.constant 0 : i32
    %c0_i32_1 = arith.constant 0 : i32
    return %c0_i32, %c0_i32_0 : i32, i32
  }
  func.func @transform_2(%arg0: i32) -> (i32, i32) {
    %c0_i32 = arith.constant 0 : i32
    %c0_i32_0 = arith.constant 0 : i32
    return %arg0, %c0_i32 : i32, i32
  }
}

</mosaic_0001>

<llo_original>
// kernel: tpu_custom_call.1
$region0: #{tpu_custom_call.1}
  #allocation0 [shape = 'u32[]', space=smem, size = 0x4, offset = 0x4, fixed_abs, tag = 'smem constant byte address 0x4 - core index']
  #allocation1 [shape = 'u32[72,128]{1,0:T(1,128)}', space=vmem, size = 0x9000, scoped, tag = 'internal scratch']
  %s0 = inlined_call_operand.vmem [shape: f32[2,6,512], index: 0, kind: input, shape index: {}]
  %s1 = inlined_call_operand.vmem [shape: f32[6,512], index: 1, kind: input, shape index: {}]
  %s2 = inlined_call_operand.hbm [shape: f32[2,6], index: 2, kind: output, shape index: {}]
  %s3 = sld [smem:[#allocation0]]
  $region18: #{tpu_custom_call.1} parent=0
    _
  %s5 = ssub.s32 1, %s3
  %s6 = scalar_select 0, %s5, %s3
  $region1: #{tpu_custom_call.1} parent=0
    #allocation2 [shape = 'u8[1024]{0}', space=vmem, size = 0x400, scoped, tag = 'output window, operand 0, single buffered']
    #allocation3 [shape = 's32[1]{0}', space=sflag, size = 0x4, scoped, tag = 'scoped memory for tpu_custom_call.1']
    %7 = vsyncpa [#allocation3], 0
    // Predicated region
    $region2: #{tpu_custom_call.1} parent=1 // pred_check
      _
    $region3: #{tpu_custom_call.1} parent=1 // pred_check_branch
      %9 = sbr.rel (0) target = $region5
    $region4: #{tpu_custom_call.1} parent=1 // pred_region
      _
    $region5: #{tpu_custom_call.1} parent=1 // pred_fallthru
      _
    // Predicated region
    $region6: #{tpu_custom_call.1} parent=1 // pred_check
      _
    $region7: #{tpu_custom_call.1} parent=1 // pred_check_branch
      %11 = sbr.rel (0) target = $region9
    $region8: #{tpu_custom_call.1} parent=1 // pred_region
      _
    $region9: #{tpu_custom_call.1} parent=1 // pred_fallthru
      _
    %v12 = vld [vmem:[%s0] sm:$0x3f]
    %v13 = vld [vmem:[%s0 + $0x8] sm:$0x3f]
    %v14 = vld [vmem:[%s0 + $0x10] sm:$0x3f]
    %v15 = vld [vmem:[%s0 + $0x18] sm:$0x3f]
    %v16 = vld [vmem:[%s0 + $0x20] sm:$0x3f]
    %v17 = vld [vmem:[%s0 + $0x28] sm:$0x3f]
    %v18 = vld [vmem:[%s0 + $0x30] sm:$0x3f]
    %v19 = vld [vmem:[%s0 + $0x38] sm:$0x3f]
    %v20 = vld [vmem:[%s1] sm:$0x3f]
    %v21 = vld [vmem:[%s1 + $0x8] sm:$0x3f]
    %v22 = vld [vmem:[%s1 + $0x10] sm:$0x3f]
    %v23 = vld [vmem:[%s1 + $0x18] sm:$0x3f]
    %v24 = vmax.f32 %v20, 0.0
    %v25 = vmax.f32 %v21, 0.0
    %v26 = vmax.f32 %v22, 0.0
    %v27 = vmax.f32 %v23, 0.0
    %v28 = vmul.f32 %v24, %v24
    %v29 = vmul.f32 %v25, %v25
    %v30 = vmul.f32 %v26, %v26
    %v31 = vmul.f32 %v27, %v27
    %vm32 = vcmask 1045504
    %v33 = vsel %vm32, %v28, 0.0
    %v34 = vsel %vm32, %v29, 0.0
    %v35 = vadd.f32 %v33, %v34
    %v36 = vsel %vm32, %v30, 0.0
    %v37 = vadd.f32 %v35, %v36
    %v38 = vsel %vm32, %v31, 0.0
    %v39 = vadd.f32 %v37, %v38
    %40 = vadd.xlane.f32.xlu0 %v39
    %v41 = vpop.xlane.xlu0 %40
    %v42 = vmax.f32 %v41, 1e-24
    %v43 = vrsqrt.pop %v42
    %v44 = vmul.f32 %v43, %v42
    %v45 = vmul.f32 %v44, %v43
    %v46 = vmul.f32 0.5, %v45
    %v47 = vsub.f32 1.5, %v46
    %v48 = vmul.f32 %v43, %v47
    %vm49 = vweird.f32 %v42
    %vm50 = vweird.f32 %v43
    %vm51 = vmor %vm49, %vm50
    %v52 = vsel %vm51, %v43, %v48
    %v53 = vmul.f32 %v12, %v12
    %v54 = vmul.f32 %v13, %v13
    %v55 = vmul.f32 %v14, %v14
    %v56 = vmul.f32 %v15, %v15
    %v57 = vmul.f32 %v16, %v16
    %v58 = vmul.f32 %v17, %v17
    %v59 = vmul.f32 %v18, %v18
    %v60 = vmul.f32 %v19, %v19
    %v61 = vsel %vm32, %v53, 0.0
    %v62 = vsel %vm32, %v54, 0.0
    %v63 = vadd.f32 %v61, %v62
    %v64 = vsel %vm32, %v55, 0.0
    %v65 = vadd.f32 %v63, %v64
    %v66 = vsel %vm32, %v56, 0.0
    %v67 = vadd.f32 %v65, %v66
    %68 = vadd.xlane.f32.xlu0 %v67
    %v69 = vpop.xlane.xlu0 %68
    %v70 = vsel %vm32, %v57, 0.0
    %v71 = vsel %vm32, %v58, 0.0
    %v72 = vadd.f32 %v70, %v71
    %v73 = vsel %vm32, %v59, 0.0
    %v74 = vadd.f32 %v72, %v73
    %v75 = vsel %vm32, %v60, 0.0
    %v76 = vadd.f32 %v74, %v75
    %77 = vadd.xlane.f32.xlu0 %v76
    %v78 = vpop.xlane.xlu0 %77
    %v79 = vmax.f32 %v69, 1e-24
    %v80 = vmax.f32 %v78, 1e-24
    %v81 = vrsqrt.pop %v79
    %v82 = vmul.f32 %v81, %v79
    %v83 = vmul.f32 %v82, %v81
    %v84 = vmul.f32 0.5, %v83
    %v85 = vsub.f32 1.5, %v84
    %v86 = vmul.f32 %v81, %v85
    %vm87 = vweird.f32 %v79
    %vm88 = vweird.f32 %v81
    %vm89 = vmor %vm87, %vm88
    %v90 = vsel %vm89, %v81, %v86
    %v91 = vrsqrt.pop %v80
    %v92 = vmul.f32 %v91, %v80
    %v93 = vmul.f32 %v92, %v91
    %v94 = vmul.f32 0.5, %v93
    %v95 = vsub.f32 1.5, %v94
    %v96 = vmul.f32 %v91, %v95
    %vm97 = vweird.f32 %v80
    %vm98 = vweird.f32 %v91
    %vm99 = vmor %vm97, %vm98
    %v100 = vsel %vm99, %v91, %v96
    %v101 = vmul.f32 %v24, %v52
    %v102 = vmul.f32 %v25, %v52
    %v103 = vmul.f32 %v26, %v52
    %v104 = vmul.f32 %v27, %v52
    %v105 = vmul.f32 %v12, %v90
    %v106 = vmul.f32 %v13, %v90
    %v107 = vmul.f32 %v14, %v90
    %v108 = vmul.f32 %v15, %v90
    %v109 = vmul.f32 %v16, %v100
    %v110 = vmul.f32 %v17, %v100
    %v111 = vmul.f32 %v18, %v100
    %v112 = vmul.f32 %v19, %v100
    %v113 = vmul.f32 %v105, %v101
    %v114 = vmul.f32 %v106, %v102
    %v115 = vmul.f32 %v107, %v103
    %v116 = vmul.f32 %v108, %v104
    %v117 = vmul.f32 %v109, %v101
    %v118 = vmul.f32 %v110, %v102
    %v119 = vmul.f32 %v111, %v103
    %v120 = vmul.f32 %v112, %v104
    %v121 = vsel %vm32, %v113, 0.0
    %v122 = vsel %vm32, %v114, 0.0
    %v123 = vadd.f32 %v121, %v122
    %v124 = vsel %vm32, %v115, 0.0
    %v125 = vadd.f32 %v123, %v124
    %v126 = vsel %vm32, %v116, 0.0
    %v127 = vadd.f32 %v125, %v126
    %128 = vadd.xlane.f32.xlu0 %v127
    %v129 = vpop.xlane.xlu0 %128
    %v130 = vsel %vm32, %v117, 0.0
    %v131 = vsel %vm32, %v118, 0.0
    %v132 = vadd.f32 %v130, %v131
    %v133 = vsel %vm32, %v119, 0.0
    %v134 = vadd.f32 %v132, %v133
    %v135 = vsel %vm32, %v120, 0.0
    %v136 = vadd.f32 %v134, %v135
    %137 = vadd.xlane.f32.xlu0 %v136
    %v138 = vpop.xlane.xlu0 %137
    %v141 = vlaneseq
    %v142 = vand.u32 %v141, 127
    %v143 = vperm.slane %v129, %v142
    %v144 = vperm.slane %v138, %v142
    %vm145 = vcmask 1041409
    %v146 = vsel %vm145, %v144, %v143
    %vm148 = vcmask 41984
    %149 = vst.msk [vmem:[#allocation2] sm:$0x3] %vm148, %v146
    // Predicated region
    $region10: #{tpu_custom_call.1} parent=1 // pred_check
      _
    $region11: #{tpu_custom_call.1} parent=1 // pred_check_branch
      %151 = sbr.rel (0) target = $region13
    $region12: #{tpu_custom_call.1} parent=1 // pred_region
      %153 = vsyncadd [#allocation3], 0
      %s155 = sshll.u32 [#allocation2], 4
      %s156 = int_to_ptr.vmem [resolvable:$true] %s155
      %s157 = sshll.u32 %s2, 4
      %s158 = int_to_ptr.hbm [resolvable:$true] %s157
      %160 = dma.vmem_to_hbm [thread:$0]  %s156, 32, %s158, [#allocation3]
    $region13: #{tpu_custom_call.1} parent=1 // pred_fallthru
      _
    // Predicated region
    $region14: #{tpu_custom_call.1} parent=1 // pred_check
      _
    $region15: #{tpu_custom_call.1} parent=1 // pred_check_branch
      %162 = sbr.rel (0) target = $region17
    $region16: #{tpu_custom_call.1} parent=1 // pred_region
      %164 = dma.done [#allocation3], 32
    $region17: #{tpu_custom_call.1} parent=1 // pred_fallthru
      _
    %165 = vsyncpa [#allocation3], 1

</llo_original>
